<compile_context>
chip_gen: v7x
topology: tpu7x:2x2x1
jax: 0.10.0
libtpu: 0.0.40
codegen_flags: <defaults>
</compile_context>

<pallas_src>
import math

import jax
import jax.numpy as jnp
from jax.experimental import pallas as pl
from jax.experimental.pallas import tpu as pltpu

D_MODEL = 32
MAX_LEN = 100
DROPOUT_P = 0.2          # module-level `dropout = 0.2` in the source script

LANES = 128              # TPU vreg lane width
# 2048 rows * 128 lanes * 4 B = 1 MiB per f32 buffer.  With 3 inputs + 1 output
# double-buffered this stays far under v7x's 64 MiB VMEM (and v5e's 16 MiB
# scoped default), so no vmem_limit_bytes override is needed.
MAX_TILE_ROWS = 2048

_DROP_THRESH = int(DROPOUT_P * (1 << 23))   # integer threshold on low 23 bits
_KEEP_SCALE = 1.0 / (1.0 - DROPOUT_P)


def make_pe_table(d_model: int, max_len: int, dtype=jnp.float32) -> jnp.ndarray:
    """Deterministic positional-encoding table, same math as the torch __init__."""
    position = jnp.arange(max_len, dtype=jnp.float32)[:, None]                    # (max_len, 1)
    div_term = jnp.exp(
        jnp.arange(0, d_model, 2, dtype=jnp.float32) * (-math.log(10000.0) / d_model)
    )                                                                             # (d_model//2,)
    angles = position * div_term                                                  # (max_len, d_model//2)
    pe = jnp.zeros((max_len, d_model), dtype=jnp.float32)
    pe = pe.at[:, 0::2].set(jnp.sin(angles))
    pe = pe.at[:, 1::2].set(jnp.cos(angles))
    return pe.astype(dtype)


# ---------------- kernels ----------------

def pe_add_kernel(x_ref, pe_ref, o_ref):
    # Lane-aligned elementwise add; pe is already broadcast/flattened to x's layout.
    o_ref[...] = x_ref[...] + pe_ref[...]


def pe_add_dropout_kernel(x_ref, pe_ref, bits_ref, o_ref):
    y = x_ref[...] + pe_ref[...]
    bits = bits_ref[...]                                   # uint32 random bits
    keep = (bits & 0x7FFFFF) >= _DROP_THRESH               # P(keep) = 1 - p
    o_ref[...] = jnp.where(keep, y * _KEEP_SCALE, 0.0)     # single mul + select


# ---------------- wrapper ----------------

def _lane_dense_shape(S: int, B: int, D: int):
    """Flattened 2D view with a 128-multiple lane dim when possible."""
    total = S * B * D
    if total % LANES == 0:
        return (total // LANES, LANES)
    # Fallback: keep (S*B, D); block equals full array dims so it is still legal.
    return (S * B, D)


def positional_encoding(x, pe_table, *, train: bool = False, rng_key=None):
    """x: (S, B, D). Returns dropout(x + pe[:S]) with the same shape/dtype."""
    S, B, D = x.shape

    # Pre-broadcast pe over batch in the wrapper (<13 KB at these sizes); the
    # kernel then needs no mid-axis broadcast machinery.
    pe_b = jnp.broadcast_to(pe_table[:S, None, :], (S, B, D)).astype(x.dtype)

    flat_shape = _lane_dense_shape(S, B, D)
    rows, lanes = flat_shape
    x2 = x.reshape(flat_shape)
    pe2 = pe_b.reshape(flat_shape)

    # Full-array block at small sizes; cap rows (multiple of 8) at large sizes so
    # double-buffered tiles fit v7x's 64 MiB VMEM as well as v5e/v6e.
    tile_rows = rows if rows <= MAX_TILE_ROWS else MAX_TILE_ROWS
    grid = (pl.cdiv(rows, tile_rows),)

    blk = pl.BlockSpec((tile_rows, lanes), lambda i: (i, 0))
    out_shape = jax.ShapeDtypeStruct(flat_shape, x.dtype)
    cparams = pltpu.CompilerParams(dimension_semantics=("parallel",))

    if train:
        if rng_key is None:
            rng_key = jax.random.PRNGKey(0)
        bits = jax.random.bits(rng_key, flat_shape, dtype=jnp.uint32)
        out = pl.pallas_call(
            pe_add_dropout_kernel,
            out_shape=out_shape,
            grid=grid,
            in_specs=[blk, blk, blk],
            out_specs=blk,
            compiler_params=cparams,
        )(x2, pe2, bits)
    else:
        # NOTE: at toy sizes a fused `x + pe` inside a neighboring kernel (or plain
        # XLA) beats any standalone pallas_call; this kernel is kept as the
        # requested Pallas implementation and scales to real shapes via tiling.
        out = pl.pallas_call(
            pe_add_kernel,
            out_shape=out_shape,
            grid=grid,
            in_specs=[blk, blk],
            out_specs=blk,
            compiler_params=cparams,
        )(x2, pe2)

    return out.reshape(S, B, D)


if __name__ == "__main__":
    key = jax.random.PRNGKey(0)
    S, B, D = 8, 2, D_MODEL
    x = jax.random.normal(key, (S, B, D), dtype=jnp.float32)

    pe_table = make_pe_table(D, MAX_LEN)

    # eval-mode forward (dropout = identity): must match the pure-JAX reference exactly
    out = jax.block_until_ready(positional_encoding(x, pe_table, train=False))
    ref = x + pe_table[:S][:, None, :]
    assert out.shape == x.shape and out.dtype == x.dtype
    assert jnp.allclose(out, ref, atol=1e-6), "mismatch vs reference"

    # train-mode forward (inverted dropout): every element must be 0 or (x+pe)/(1-p)
    out_train = jax.block_until_ready(
        positional_encoding(x, pe_table, train=True, rng_key=jax.random.PRNGKey(42))
    )
    assert out_train.shape == x.shape
    scaled = ref * _KEEP_SCALE
    ok = jnp.isclose(out_train, 0.0, atol=1e-6) | jnp.isclose(out_train, scaled, atol=1e-5)
    assert bool(jnp.all(ok)), "dropout output not in {0, (x+pe)/(1-p)}"

    print("KERNEL_OK")
</pallas_src>

<mosaic_0001>
module attributes {stable_mosaic.version = 11 : i64} {
  func.func @pe_add_kernel(%arg0: i32, %arg1: memref<4x128xf32, #tpu.memory_space<vmem>>, %arg2: memref<4x128xf32, #tpu.memory_space<vmem>>, %arg3: memref<4x128xf32, #tpu.memory_space<vmem>>) attributes {dimension_semantics = [#tpu.dimension_semantics<parallel>], iteration_bounds = array<i64: 1>, scalar_prefetch = 0 : i64, scratch_operands = 0 : i64, tpu.core_type = #tpu.core_type<tc>, window_params = [{transform_indices = @transform_0, window_bounds = array<i64: 4, 128>}, {transform_indices = @transform_1, window_bounds = array<i64: 4, 128>}, {transform_indices = @transform_2, window_bounds = array<i64: 4, 128>}]} {
    %c0 = arith.constant 0 : index
    %c0_0 = arith.constant 0 : index
    %0 = vector.load %arg1[%c0, %c0_0] : memref<4x128xf32, #tpu.memory_space<vmem>>, vector<4x128xf32>
    %c0_1 = arith.constant 0 : index
    %c0_2 = arith.constant 0 : index
    %1 = vector.load %arg2[%c0_1, %c0_2] : memref<4x128xf32, #tpu.memory_space<vmem>>, vector<4x128xf32>
    %2 = arith.addf %0, %1 : vector<4x128xf32>
    %c0_3 = arith.constant 0 : index
    %c0_4 = arith.constant 0 : index
    %3 = vector.load %arg3[%c0_3, %c0_4] : memref<4x128xf32, #tpu.memory_space<vmem>>, vector<4x128xf32>
    tpu.vector_store %arg3[%c0_3, %c0_4], %2 {strides = array<i32>} : memref<4x128xf32, #tpu.memory_space<vmem>>, vector<4x128xf32>,
    return
  }
  func.func @transform_0(%arg0: i32) -> (i32, i32) {
    %c0_i32 = arith.constant 0 : i32
    %c0_i32_0 = arith.constant 0 : i32
    return %arg0, %c0_i32 : i32, i32
  }
  func.func @transform_1(%arg0: i32) -> (i32, i32) {
    %c0_i32 = arith.constant 0 : i32
    %c0_i32_0 = arith.constant 0 : i32
    return %arg0, %c0_i32 : i32, i32
  }
  func.func @transform_2(%arg0: i32) -> (i32, i32) {
    %c0_i32 = arith.constant 0 : i32
    %c0_i32_0 = arith.constant 0 : i32
    return %arg0, %c0_i32 : i32, i32
  }
}

</mosaic_0001>

<llo_original>
// kernel: tpu_custom_call.1
$region0: #{tpu_custom_call.1}
  #allocation0 [shape = 'u32[]', space=smem, size = 0x4, offset = 0x4, fixed_abs, tag = 'smem constant byte address 0x4 - core index']
  #allocation1 [shape = 'u32[144,128]{1,0:T(1,128)}', space=vmem, size = 0x12000, scoped, tag = 'internal scratch']
  %s0 = inlined_call_operand.hbm [shape: f32[4,128], index: 0, kind: input, shape index: {}]
  %s1 = inlined_call_operand.hbm [shape: f32[4,128], index: 1, kind: input, shape index: {}]
  %s2 = inlined_call_operand.hbm [shape: f32[4,128], index: 2, kind: output, shape index: {}]
  %s3 = sld [smem:[#allocation0]]
  $region26: #{tpu_custom_call.1} parent=0
    _
  %s5 = ssub.s32 1, %s3
  %s6 = scalar_select 0, %s5, %s3
  $region1: #{tpu_custom_call.1} parent=0
    #allocation2 [shape = 'u8[2048]{0}', space=vmem, size = 0x800, scoped, tag = 'input window, operand 0, single buffered']
    #allocation3 [shape = 's32[1]{0}', space=sflag, size = 0x4, scoped, tag = 'scoped memory for tpu_custom_call.1']
    #allocation4 [shape = 's32[1]{0}', space=sflag, size = 0x4, scoped, tag = 'scoped memory for tpu_custom_call.1']
    #allocation5 [shape = 'u8[2048]{0}', space=vmem, size = 0x800, scoped, tag = 'input window, operand 1, single buffered']
    #allocation6 [shape = 's32[1]{0}', space=sflag, size = 0x4, scoped, tag = 'scoped memory for tpu_custom_call.1']
    #allocation7 [shape = 'u8[2048]{0}', space=vmem, size = 0x800, scoped, tag = 'output window, operand 0, single buffered']
    %7 = vsyncpa [#allocation3], 0
    %8 = vsyncpa [#allocation6], 0
    %9 = vsyncpa [#allocation4], 0
    // Predicated region
    $region2: #{tpu_custom_call.1} parent=1 // pred_check
      _
    $region3: #{tpu_custom_call.1} parent=1 // pred_check_branch
      %11 = sbr.rel (0) target = $region5
    $region4: #{tpu_custom_call.1} parent=1 // pred_region
      %s13 = ssub.s32 64, 64
      %14 = vsyncadd [#allocation3], %s13
      %s16 = sshll.u32 [#allocation2], 4
      %s17 = int_to_ptr.vmem [resolvable:$true] %s16
      %19 = dma.hbm_to_vmem [thread:$0]  %s0, 64, %s17, [#allocation3]
    $region5: #{tpu_custom_call.1} parent=1 // pred_fallthru
      _
    // Predicated region
    $region6: #{tpu_custom_call.1} parent=1 // pred_check
      _
    $region7: #{tpu_custom_call.1} parent=1 // pred_check_branch
      %21 = sbr.rel (0) target = $region9
    $region8: #{tpu_custom_call.1} parent=1 // pred_region
      %s23 = ssub.s32 64, 64
      %24 = vsyncadd [#allocation6], %s23
      %s26 = sshll.u32 [#allocation5], 4
      %s27 = int_to_ptr.vmem [resolvable:$true] %s26
      %29 = dma.hbm_to_vmem [thread:$0]  %s1, 64, %s27, [#allocation6]
    $region9: #{tpu_custom_call.1} parent=1 // pred_fallthru
      _
    // Predicated region
    $region10: #{tpu_custom_call.1} parent=1 // pred_check
      _
    $region11: #{tpu_custom_call.1} parent=1 // pred_check_branch
      %31 = sbr.rel (0) target = $region13
    $region12: #{tpu_custom_call.1} parent=1 // pred_region
      %32 = dma.done [#allocation3], 64
    $region13: #{tpu_custom_call.1} parent=1 // pred_fallthru
      _
    // Predicated region
    $region14: #{tpu_custom_call.1} parent=1 // pred_check
      _
    $region15: #{tpu_custom_call.1} parent=1 // pred_check_branch
      %34 = sbr.rel (0) target = $region17
    $region16: #{tpu_custom_call.1} parent=1 // pred_region
      %35 = dma.done [#allocation6], 64
    $region17: #{tpu_custom_call.1} parent=1 // pred_fallthru
      _
    %v36 = vld [vmem:[#allocation2] sm:$0xf]
    %v37 = vld [vmem:[#allocation5] sm:$0xf]
    %v38 = vadd.f32 %v36, %v37
    %39 = vst [vmem:[#allocation7] sm:$0xf] %v38
    // Predicated region
    $region18: #{tpu_custom_call.1} parent=1 // pred_check
      _
    $region19: #{tpu_custom_call.1} parent=1 // pred_check_branch
      %41 = sbr.rel (0) target = $region21
    $region20: #{tpu_custom_call.1} parent=1 // pred_region
      %s43 = ssub.s32 64, 64
      %44 = vsyncadd [#allocation4], %s43
      %s46 = sshll.u32 [#allocation7], 4
      %s47 = int_to_ptr.vmem [resolvable:$true] %s46
      %49 = dma.vmem_to_hbm [thread:$0]  %s47, 64, %s2, [#allocation4]
    $region21: #{tpu_custom_call.1} parent=1 // pred_fallthru
      _
    // Predicated region
    $region22: #{tpu_custom_call.1} parent=1 // pred_check
      _
    $region23: #{tpu_custom_call.1} parent=1 // pred_check_branch
      %51 = sbr.rel (0) target = $region25
    $region24: #{tpu_custom_call.1} parent=1 // pred_region
      %52 = dma.done [#allocation4], 64
    $region25: #{tpu_custom_call.1} parent=1 // pred_fallthru
      _
    %53 = vsyncpa [#allocation3], 1
    %54 = vsyncpa [#allocation6], 1
    %55 = vsyncpa [#allocation4], 1

</llo_original>
